<compile_context>
chip_gen: v7x
topology: tpu7x:2x2x1
jax: 0.10.0
libtpu: 0.0.40
codegen_flags: <defaults>
</compile_context>

<pallas_src>
import functools

import jax
import jax.numpy as jnp
from jax.experimental import pallas as pl
from jax.experimental.pallas import tpu as pltpu

_EPS = 2.220446049250313e-16  # np.finfo(float).eps
_LANES = 128
_STATS = 5  # sum(I), sum(J), sum(I*I), sum(J*J), sum(I*J)


def _gcc_sums_kernel(i_ref, j_ref, out_ref):
    """Accumulate the five GCC partial sums into a resident (5, 8, 128) block."""
    r = pl.program_id(1)  # reduction ("arbitrary") axis

    # Zero-init the small resident accumulator once per split.
    @pl.when(r == 0)
    def _():
        out_ref[...] = jnp.zeros_like(out_ref)

    # Upcast in-register; trace-time no-op when the input is already f32.
    i = i_ref[...].astype(jnp.float32)
    j = j_ref[...].astype(jnp.float32)

    def blk_sum(x):
        # (tm, 128) -> (tm//8, 8, 128) groups whole (8, 128) vreg tiles, so the
        # reshape is layout-preserving and the axis-0 reduction is pure VPU
        # vreg adds (no XLU work, no VMEM temporaries for x*x / x*y).
        return jnp.sum(x.reshape(-1, 8, _LANES), axis=0)

    # Five tiny (8, 128) read-modify-writes per step; negligible store traffic.
    out_ref[0] += blk_sum(i)
    out_ref[1] += blk_sum(j)
    out_ref[2] += blk_sum(i * i)
    out_ref[3] += blk_sum(j * j)
    out_ref[4] += blk_sum(i * j)


def _round_up(x, m):
    return ((x + m - 1) // m) * m


@functools.partial(jax.jit, static_argnames=("tm_cap",))
def gcc(I, J, *, tm_cap=4096):
    """Pallas implementation of GCC.forward(I, J) -> scalar cc."""
    assert I.shape == J.shape
    n = I.size  # true element count (zero padding does not affect the sums)

    rows = -(-n // _LANES)  # rows of 128 lanes needed
    # v7x megacore: split over both TensorCores whenever each still gets at
    # least ~512 rows of work; size-1 (serial no-op) split otherwise.
    P = 2 if rows >= 2 * 512 else 1
    rows_per_core = -(-rows // P)
    tm = min(tm_cap, _round_up(rows_per_core, 32))  # 32-row alignment
    steps = -(-rows_per_core // tm)                 # reduction steps per split
    rows_padded = P * steps * tm
    n_padded = rows_padded * _LANES

    def _prep(x):
        x = jnp.ravel(x)  # keep native dtype; upcast in-kernel
        if n_padded != n:
            # Zero padding is benign: the glue divides by the true n.
            x = jnp.pad(x, (0, n_padded - n))
        return x.reshape(rows_padded, _LANES)

    I2d = _prep(I)
    J2d = _prep(J)

    bytes_accessed = n_padded * (I2d.dtype.itemsize + J2d.dtype.itemsize)

    sums = pl.pallas_call(
        _gcc_sums_kernel,
        out_shape=jax.ShapeDtypeStruct((P * _STATS, 8, _LANES), jnp.float32),
        grid_spec=pltpu.PrefetchScalarGridSpec(
            num_scalar_prefetch=0,
            grid=(P, steps),
            in_specs=[
                pl.BlockSpec((tm, _LANES), lambda p, r: (p * steps + r, 0)),
                pl.BlockSpec((tm, _LANES), lambda p, r: (p * steps + r, 0)),
            ],
            # Per-split resident output block; stays in VMEM across the whole
            # reduction axis and is written back once per split.
            out_specs=pl.BlockSpec((_STATS, 8, _LANES), lambda p, r: (p, 0, 0)),
        ),
        compiler_params=pltpu.CompilerParams(
            dimension_semantics=("parallel", "arbitrary"),
            vmem_limit_bytes=32 << 20,  # ~8 MiB double-buffered inputs at tm=4096
        ),
        cost_estimate=pl.CostEstimate(
            flops=8 * n_padded, transcendentals=0, bytes_accessed=bytes_accessed),
    )(I2d, J2d)

    # Glue: collapse splits + sublanes + lanes, then combine into the cc.
    totals = jnp.sum(sums.reshape(P, _STATS, 8, _LANES), axis=(0, 2, 3))  # (5,)
    s_i, s_j, s_i2, s_j2, s_ij = (totals[0], totals[1], totals[2],
                                  totals[3], totals[4])

    inv_n = 1.0 / n
    I_ave = s_i * inv_n
    J_ave = s_j * inv_n
    I2_ave = s_i2 * inv_n
    J2_ave = s_j2 * inv_n
    IJ_ave = s_ij * inv_n

    cross = IJ_ave - I_ave * J_ave
    I_var = I2_ave - I_ave * I_ave
    J_var = J2_ave - J_ave * J_ave
    # NOTE: matches the PyTorch formula exactly (no clamping); f32 cancellation
    # for huge-n / large-mean inputs mirrors the reference behavior.
    cc = cross / (jnp.sqrt(I_var) * jnp.sqrt(J_var) + _EPS)
    return 1.0 * cc


def _gcc_ref(I, J):
    I = I.astype(jnp.float32)
    J = J.astype(jnp.float32)
    I_ave, J_ave = I.mean(), J.mean()
    I2_ave, J2_ave = (I ** 2).mean(), (J ** 2).mean()
    IJ_ave = (I * J).mean()
    cross = IJ_ave - I_ave * J_ave
    I_var = I2_ave - I_ave ** 2
    J_var = J2_ave - J_ave ** 2
    return cross / (jnp.sqrt(I_var) * jnp.sqrt(J_var) + _EPS)


if __name__ == "__main__":
    key = jax.random.PRNGKey(0)
    k1, k2 = jax.random.split(key)
    # NCHW-style inputs, consistent with how GCC is used as an image loss.
    I = jax.random.normal(k1, (2, 4, 16, 16), dtype=jnp.float32)
    # Make J correlated with I so cc is nontrivial.
    J = 0.7 * I + 0.3 * jax.random.normal(k2, (2, 4, 16, 16), dtype=jnp.float32)

    cc = gcc(I, J)
    cc = jax.block_until_ready(cc)

    ref = _gcc_ref(I, J)
    assert jnp.allclose(cc, ref, rtol=1e-5, atol=1e-6), (cc, ref)

    print("KERNEL_OK")
</pallas_src>

<mosaic_0001>
module attributes {stable_mosaic.version = 11 : i64} {
  func.func @_gcc_sums_kernel(%arg0: i32, %arg1: i32, %arg2: memref<32x128xf32, #tpu.memory_space<vmem>>, %arg3: memref<32x128xf32, #tpu.memory_space<vmem>>, %arg4: memref<5x8x128xf32, #tpu.memory_space<vmem>>) attributes {dimension_semantics = [#tpu.dimension_semantics<parallel>, #tpu.dimension_semantics<arbitrary>], iteration_bounds = array<i64: 1, 1>, scalar_prefetch = 0 : i64, scratch_operands = 0 : i64, tpu.core_type = #tpu.core_type<tc>, window_params = [{transform_indices = @transform_0, window_bounds = array<i64: 32, 128>}, {transform_indices = @transform_1, window_bounds = array<i64: 32, 128>}, {transform_indices = @transform_2, window_bounds = array<i64: 5, 8, 128>}]} {
    %c0_i32 = arith.constant 0 : i32
    %0 = arith.cmpi eq, %arg1, %c0_i32 : i32
    %1 = arith.extui %0 : i1 to i32
    %c0_i32_0 = arith.constant 0 : i32
    %2 = arith.cmpi ne, %1, %c0_i32_0 : i32
    scf.if %2 {
      %cst_34 = arith.constant 0.000000e+00 : f32
      %48 = vector.broadcast %cst_34 : f32 to vector<5x8x128xf32>
      %c0_35 = arith.constant 0 : index
      %c0_36 = arith.constant 0 : index
      %c0_37 = arith.constant 0 : index
      %49 = vector.load %arg4[%c0_35, %c0_36, %c0_37] : memref<5x8x128xf32, #tpu.memory_space<vmem>>, vector<5x8x128xf32>
      tpu.vector_store %arg4[%c0_35, %c0_36, %c0_37], %48 {strides = array<i32>} : memref<5x8x128xf32, #tpu.memory_space<vmem>>, vector<5x8x128xf32>,
    } else {
    }
    %c0 = arith.constant 0 : index
    %c0_1 = arith.constant 0 : index
    %3 = vector.load %arg2[%c0, %c0_1] : memref<32x128xf32, #tpu.memory_space<vmem>>, vector<32x128xf32>
    %c0_2 = arith.constant 0 : index
    %c0_3 = arith.constant 0 : index
    %4 = vector.load %arg3[%c0_2, %c0_3] : memref<32x128xf32, #tpu.memory_space<vmem>>, vector<32x128xf32>
    %c0_4 = arith.constant 0 : index
    %c0_5 = arith.constant 0 : index
    %c0_6 = arith.constant 0 : index
    %5 = vector.load %arg4[%c0_4, %c0_5, %c0_6] : memref<5x8x128xf32, #tpu.memory_space<vmem>>, vector<1x8x128xf32>
    %6 = vector.shape_cast %5 : vector<1x8x128xf32> to vector<8x128xf32>
    %7 = vector.shape_cast %3 : vector<32x128xf32> to vector<4x8x128xf32>
    %cst = arith.constant dense<0.000000e+00> : vector<8x128xf32>
    %8 = vector.multi_reduction <add>, %7, %cst [0] : vector<4x8x128xf32> to vector<8x128xf32>
    %9 = arith.addf %6, %8 : vector<8x128xf32>
    %c0_7 = arith.constant 0 : index
    %c0_8 = arith.constant 0 : index
    %c0_9 = arith.constant 0 : index
    %10 = vector.load %arg4[%c0_7, %c0_8, %c0_9] : memref<5x8x128xf32, #tpu.memory_space<vmem>>, vector<1x8x128xf32>
    %11 = vector.shape_cast %10 : vector<1x8x128xf32> to vector<8x128xf32>
    %12 = vector.shape_cast %9 : vector<8x128xf32> to vector<1x8x128xf32>
    tpu.vector_store %arg4[%c0_7, %c0_8, %c0_9], %12 {strides = array<i32>} : memref<5x8x128xf32, #tpu.memory_space<vmem>>, vector<1x8x128xf32>,
    %c1 = arith.constant 1 : index
    %c0_10 = arith.constant 0 : index
    %c0_11 = arith.constant 0 : index
    %13 = vector.load %arg4[%c1, %c0_10, %c0_11] : memref<5x8x128xf32, #tpu.memory_space<vmem>>, vector<1x8x128xf32>
    %14 = vector.shape_cast %13 : vector<1x8x128xf32> to vector<8x128xf32>
    %15 = vector.shape_cast %4 : vector<32x128xf32> to vector<4x8x128xf32>
    %cst_12 = arith.constant dense<0.000000e+00> : vector<8x128xf32>
    %16 = vector.multi_reduction <add>, %15, %cst_12 [0] : vector<4x8x128xf32> to vector<8x128xf32>
    %17 = arith.addf %14, %16 : vector<8x128xf32>
    %c1_13 = arith.constant 1 : index
    %c0_14 = arith.constant 0 : index
    %c0_15 = arith.constant 0 : index
    %18 = vector.load %arg4[%c1_13, %c0_14, %c0_15] : memref<5x8x128xf32, #tpu.memory_space<vmem>>, vector<1x8x128xf32>
    %19 = vector.shape_cast %18 : vector<1x8x128xf32> to vector<8x128xf32>
    %20 = vector.shape_cast %17 : vector<8x128xf32> to vector<1x8x128xf32>
    tpu.vector_store %arg4[%c1_13, %c0_14, %c0_15], %20 {strides = array<i32>} : memref<5x8x128xf32, #tpu.memory_space<vmem>>, vector<1x8x128xf32>,
    %c2 = arith.constant 2 : index
    %c0_16 = arith.constant 0 : index
    %c0_17 = arith.constant 0 : index
    %21 = vector.load %arg4[%c2, %c0_16, %c0_17] : memref<5x8x128xf32, #tpu.memory_space<vmem>>, vector<1x8x128xf32>
    %22 = vector.shape_cast %21 : vector<1x8x128xf32> to vector<8x128xf32>
    %23 = arith.mulf %3, %3 : vector<32x128xf32>
    %24 = vector.shape_cast %23 : vector<32x128xf32> to vector<4x8x128xf32>
    %cst_18 = arith.constant dense<0.000000e+00> : vector<8x128xf32>
    %25 = vector.multi_reduction <add>, %24, %cst_18 [0] : vector<4x8x128xf32> to vector<8x128xf32>
    %26 = arith.addf %22, %25 : vector<8x128xf32>
    %c2_19 = arith.constant 2 : index
    %c0_20 = arith.constant 0 : index
    %c0_21 = arith.constant 0 : index
    %27 = vector.load %arg4[%c2_19, %c0_20, %c0_21] : memref<5x8x128xf32, #tpu.memory_space<vmem>>, vector<1x8x128xf32>
    %28 = vector.shape_cast %27 : vector<1x8x128xf32> to vector<8x128xf32>
    %29 = vector.shape_cast %26 : vector<8x128xf32> to vector<1x8x128xf32>
    tpu.vector_store %arg4[%c2_19, %c0_20, %c0_21], %29 {strides = array<i32>} : memref<5x8x128xf32, #tpu.memory_space<vmem>>, vector<1x8x128xf32>,
    %c3 = arith.constant 3 : index
    %c0_22 = arith.constant 0 : index
    %c0_23 = arith.constant 0 : index
    %30 = vector.load %arg4[%c3, %c0_22, %c0_23] : memref<5x8x128xf32, #tpu.memory_space<vmem>>, vector<1x8x128xf32>
    %31 = vector.shape_cast %30 : vector<1x8x128xf32> to vector<8x128xf32>
    %32 = arith.mulf %4, %4 : vector<32x128xf32>
    %33 = vector.shape_cast %32 : vector<32x128xf32> to vector<4x8x128xf32>
    %cst_24 = arith.constant dense<0.000000e+00> : vector<8x128xf32>
    %34 = vector.multi_reduction <add>, %33, %cst_24 [0] : vector<4x8x128xf32> to vector<8x128xf32>
    %35 = arith.addf %31, %34 : vector<8x128xf32>
    %c3_25 = arith.constant 3 : index
    %c0_26 = arith.constant 0 : index
    %c0_27 = arith.constant 0 : index
    %36 = vector.load %arg4[%c3_25, %c0_26, %c0_27] : memref<5x8x128xf32, #tpu.memory_space<vmem>>, vector<1x8x128xf32>
    %37 = vector.shape_cast %36 : vector<1x8x128xf32> to vector<8x128xf32>
    %38 = vector.shape_cast %35 : vector<8x128xf32> to vector<1x8x128xf32>
    tpu.vector_store %arg4[%c3_25, %c0_26, %c0_27], %38 {strides = array<i32>} : memref<5x8x128xf32, #tpu.memory_space<vmem>>, vector<1x8x128xf32>,
    %c4 = arith.constant 4 : index
    %c0_28 = arith.constant 0 : index
    %c0_29 = arith.constant 0 : index
    %39 = vector.load %arg4[%c4, %c0_28, %c0_29] : memref<5x8x128xf32, #tpu.memory_space<vmem>>, vector<1x8x128xf32>
    %40 = vector.shape_cast %39 : vector<1x8x128xf32> to vector<8x128xf32>
    %41 = arith.mulf %3, %4 : vector<32x128xf32>
    %42 = vector.shape_cast %41 : vector<32x128xf32> to vector<4x8x128xf32>
    %cst_30 = arith.constant dense<0.000000e+00> : vector<8x128xf32>
    %43 = vector.multi_reduction <add>, %42, %cst_30 [0] : vector<4x8x128xf32> to vector<8x128xf32>
    %44 = arith.addf %40, %43 : vector<8x128xf32>
    %c4_31 = arith.constant 4 : index
    %c0_32 = arith.constant 0 : index
    %c0_33 = arith.constant 0 : index
    %45 = vector.load %arg4[%c4_31, %c0_32, %c0_33] : memref<5x8x128xf32, #tpu.memory_space<vmem>>, vector<1x8x128xf32>
    %46 = vector.shape_cast %45 : vector<1x8x128xf32> to vector<8x128xf32>
    %47 = vector.shape_cast %44 : vector<8x128xf32> to vector<1x8x128xf32>
    tpu.vector_store %arg4[%c4_31, %c0_32, %c0_33], %47 {strides = array<i32>} : memref<5x8x128xf32, #tpu.memory_space<vmem>>, vector<1x8x128xf32>,
    return
  }
  func.func @transform_0(%arg0: i32, %arg1: i32) -> (i32, i32) {
    %c1_i32 = arith.constant 1 : i32
    %0 = arith.muli %arg0, %c1_i32 : i32
    %1 = arith.addi %0, %arg1 : i32
    %c0_i32 = arith.constant 0 : i32
    %c0_i32_0 = arith.constant 0 : i32
    return %1, %c0_i32 : i32, i32
  }
  func.func @transform_1(%arg0: i32, %arg1: i32) -> (i32, i32) {
    %c1_i32 = arith.constant 1 : i32
    %0 = arith.muli %arg0, %c1_i32 : i32
    %1 = arith.addi %0, %arg1 : i32
    %c0_i32 = arith.constant 0 : i32
    %c0_i32_0 = arith.constant 0 : i32
    return %1, %c0_i32 : i32, i32
  }
  func.func @transform_2(%arg0: i32, %arg1: i32) -> (i32, i32, i32) {
    %c0_i32 = arith.constant 0 : i32
    %c0_i32_0 = arith.constant 0 : i32
    %c0_i32_1 = arith.constant 0 : i32
    return %arg0, %c0_i32, %c0_i32_0 : i32, i32, i32
  }
}

</mosaic_0001>

<llo_original>
// kernel: gcc.1
$region0: #{gcc.1}
  #allocation0 [shape = 'u32[]', space=smem, size = 0x4, offset = 0x4, fixed_abs, tag = 'smem constant byte address 0x4 - core index']
  #allocation1 [shape = 'u32[144,128]{1,0:T(1,128)}', space=vmem, size = 0x12000, scoped, tag = 'internal scratch']
  %s0 = inlined_call_operand.vmem [shape: f32[32,128], index: 0, kind: input, shape index: {}]
  %s1 = inlined_call_operand.vmem [shape: f32[32,128], index: 1, kind: input, shape index: {}]
  %s2 = inlined_call_operand.vmem [shape: f32[5,8,128], index: 2, kind: output, shape index: {}]
  %s3 = sld [smem:[#allocation0]]
  $region22: #{gcc.1} parent=0
    _
  %s5 = ssub.s32 1, %s3
  %s6 = scalar_select 0, %s5, %s3
  // Predicated region
  $region2: #{gcc.1} parent=0 // pred_check
    _
  $region3: #{gcc.1} parent=0 // pred_check_branch
    %8 = sbr.rel (0) target = $region5
  $region4: #{gcc.1} parent=0 // pred_region
    %s9 = sadd.s32 0, 0
    %s10 = smul.u32 4, %s9
    %p11 = scmp.lt.s32.totalorder %s10, 3
    %s12 = scalar_select %p11, %s10, 3
    %s13 = smul.addr %s12, 8
    %s14 = scalar_lea.vmem %s0, %s13
    %s15 = sadd.s32 0, 0
    %s16 = smul.u32 4, %s15
  $region5: #{gcc.1} parent=0 // pred_fallthru
    _
  // Predicated region
  $region6: #{gcc.1} parent=0 // pred_check
    _
  $region7: #{gcc.1} parent=0 // pred_check_branch
    %18 = sbr.rel (0) target = $region9
  $region8: #{gcc.1} parent=0 // pred_region
    %s19 = sadd.s32 0, 0
    %s20 = smul.u32 4, %s19
    %p21 = scmp.lt.s32.totalorder %s20, 3
    %s22 = scalar_select %p21, %s20, 3
    %s23 = smul.addr %s22, 8
    %s24 = scalar_lea.vmem %s1, %s23
    %s25 = sadd.s32 0, 0
    %s26 = smul.u32 4, %s25
  $region9: #{gcc.1} parent=0 // pred_fallthru
    _
  %s27 = sadd.s32 0, 0
  %s28 = smul.u32 4, %s27
  %p29 = scmp.lt.s32.totalorder %s28, 3
  %s30 = scalar_select %p29, %s28, 3
  %s31 = smul.addr %s30, 8
  %s32 = scalar_lea.vmem %s0, %s31
  %s33 = sadd.s32 0, 0
  %s34 = smul.u32 4, %s33
  %p35 = scmp.lt.s32.totalorder %s34, 3
  %s36 = scalar_select %p35, %s34, 3
  %s37 = smul.addr %s36, 8
  %s38 = scalar_lea.vmem %s1, %s37
  %s39 = sadd.s32 0, 0
  %s40 = smul.u32 4, %s39
  %p41 = scmp.lt.s32.totalorder %s40, 3
  %s42 = scalar_select %p41, %s40, 3
  %s43 = smul.addr %s42, 8
  %s44 = scalar_lea.vmem %s0, %s43
  %s45 = sadd.s32 0, 0
  %s46 = smul.u32 4, %s45
  %s47 = sadd.s32 0, 0
  %s48 = smul.u32 4, %s47
  %p49 = scmp.lt.s32.totalorder %s48, 3
  %s50 = scalar_select %p49, %s48, 3
  %s51 = smul.addr %s50, 8
  %s52 = scalar_lea.vmem %s1, %s51
  %s53 = sadd.s32 0, 0
  %s54 = smul.u32 4, %s53
  %p55 = scmp.eq.s32.totalorder 0, 0
  // Predicated region
  $region10: #{gcc.1} parent=0 // pred_check
    %p56 = pneg %p55
  $region11: #{gcc.1} parent=0 // pred_check_branch
    %58 = sbr.rel (%p56) target = $region13
  $region12: #{gcc.1} parent=0 // pred_region
    %59 = vst [vmem:[%s2] sm:$0xff] 0.0
    %60 = vst [vmem:[%s2 + $0x8] sm:$0xff] 0.0
    %61 = vst [vmem:[%s2 + $0x10] sm:$0xff] 0.0
    %62 = vst [vmem:[%s2 + $0x18] sm:$0xff] 0.0
    %63 = vst [vmem:[%s2 + $0x20] sm:$0xff] 0.0
  $region13: #{gcc.1} parent=0 // pred_fallthru
    _
  %v64 = vld [vmem:[%s44] sm:$0xff]
  %v65 = vld [vmem:[%s44 + $0x8] sm:$0xff]
  %v66 = vld [vmem:[%s44 + $0x10] sm:$0xff]
  %v67 = vld [vmem:[%s44 + $0x18] sm:$0xff]
  %v68 = vld [vmem:[%s52] sm:$0xff]
  %v69 = vld [vmem:[%s52 + $0x8] sm:$0xff]
  %v70 = vld [vmem:[%s52 + $0x10] sm:$0xff]
  %v71 = vld [vmem:[%s52 + $0x18] sm:$0xff]
  %v72 = vld [vmem:[%s2] sm:$0xff]
  %v73 = vadd.f32 %v64, %v65
  %v74 = vadd.f32 %v73, %v66
  %v75 = vadd.f32 %v74, %v67
  %v76 = vadd.f32 %v72, %v75
  %77 = vst [vmem:[%s2] sm:$0xff] %v76
  %s78 = scalar_lea.vmem %s2, 8
  %v79 = vld [vmem:[%s78] sm:$0xff]
  %v80 = vadd.f32 %v68, %v69
  %v81 = vadd.f32 %v80, %v70
  %v82 = vadd.f32 %v81, %v71
  %v83 = vadd.f32 %v79, %v82
  %84 = vst [vmem:[%s78] sm:$0xff] %v83
  %s85 = scalar_lea.vmem %s2, 16
  %v86 = vld [vmem:[%s85] sm:$0xff]
  %v87 = vmul.f32 %v64, %v64
  %v88 = vmul.f32 %v65, %v65
  %v89 = vmul.f32 %v66, %v66
  %v90 = vmul.f32 %v67, %v67
  %v91 = vadd.f32 %v87, %v88
  %v92 = vadd.f32 %v91, %v89
  %v93 = vadd.f32 %v92, %v90
  %v94 = vadd.f32 %v86, %v93
  %95 = vst [vmem:[%s85] sm:$0xff] %v94
  %s96 = scalar_lea.vmem %s2, 24
  %v97 = vld [vmem:[%s96] sm:$0xff]
  %v98 = vmul.f32 %v68, %v68
  %v99 = vmul.f32 %v69, %v69
  %v100 = vmul.f32 %v70, %v70
  %v101 = vmul.f32 %v71, %v71
  %v102 = vadd.f32 %v98, %v99
  %v103 = vadd.f32 %v102, %v100
  %v104 = vadd.f32 %v103, %v101
  %v105 = vadd.f32 %v97, %v104
  %106 = vst [vmem:[%s96] sm:$0xff] %v105
  %s107 = scalar_lea.vmem %s2, 32
  %v108 = vld [vmem:[%s107] sm:$0xff]
  %v109 = vmul.f32 %v64, %v68
  %v110 = vmul.f32 %v65, %v69
  %v111 = vmul.f32 %v66, %v70
  %v112 = vmul.f32 %v67, %v71
  %v113 = vadd.f32 %v109, %v110
  %v114 = vadd.f32 %v113, %v111
  %v115 = vadd.f32 %v114, %v112
  %v116 = vadd.f32 %v108, %v115
  %117 = vst [vmem:[%s107] sm:$0xff] %v116
  // Predicated region
  $region14: #{gcc.1} parent=0 // pred_check
    _
  $region15: #{gcc.1} parent=0 // pred_check_branch
    %119 = sbr.rel (0) target = $region17
  $region16: #{gcc.1} parent=0 // pred_region
    _
  $region17: #{gcc.1} parent=0 // pred_fallthru
    _
  // Predicated region
  $region18: #{gcc.1} parent=0 // pred_check
    _
  $region19: #{gcc.1} parent=0 // pred_check_branch
    %121 = sbr.rel (0) target = $region21
  $region20: #{gcc.1} parent=0 // pred_region
    _
  $region21: #{gcc.1} parent=0 // pred_fallthru
    _

</llo_original>
